<compile_context>
chip_gen: v7x
topology: tpu7x:2x2x1
jax: 0.10.0
libtpu: 0.0.40
codegen_flags: <defaults>
</compile_context>

<pallas_src>
import functools

import jax
import jax.numpy as jnp
from jax import lax
from jax.experimental import pallas as pl
from jax.experimental.pallas import tpu as pltpu

BETA = 0.1
NEG_SLOPE = 0.01


def _graph_loss_kernel(d_ref, dist_ref, direct_ref, out_ref,
                       dist_acc_ref, direct_acc_ref, *, b_total):
    tb = d_ref.shape[0]
    n = d_ref.shape[1]
    g = pl.program_id(0)
    ragged = (b_total % tb) != 0          # static Python bool

    row = lax.broadcasted_iota(jnp.int32, (n, n), 0)
    col = lax.broadcasted_iota(jnp.int32, (n, n), 1)
    offdiag = row != col                  # (n, n), shared by every slice

    zero = jnp.float32(0.0)
    one = jnp.float32(1.0)
    three = jnp.float32(3.0)
    slope = jnp.float32(NEG_SLOPE)

    # Per-grid-step accumulators (one vreg each).  Scratch persists across
    # grid steps, so zero them at the top of every step.
    dist_acc_ref[...] = jnp.zeros_like(dist_acc_ref)
    direct_acc_ref[...] = jnp.zeros_like(direct_acc_ref)

    @pl.loop(0, tb)
    def _(i):
        def do_slice():
            D = d_ref[i].astype(jnp.float32)          # (n, n)
            D_T = D.T                                  # one XLU transpose/slice
            dist = dist_ref[i].astype(jnp.float32)
            direct = direct_ref[i].astype(jnp.float32)

            # ground_dist = gpd + gpd^T, restricted to the off-diagonal
            gpd = jnp.where((D > zero) & (D < three), D, zero)
            gpd_t = jnp.where((D_T > zero) & (D_T < three), D_T, zero)
            gd_off = jnp.where(offdiag, gpd + gpd_t, zero)

            # cross entropy in log-split form:
            #   sum_offdiag gd*log(dist) - sum_rows (sum_offdiag gd)*log(rowsum)
            # mask the log ARGUMENT (not the product) so a zero diagonal in the
            # predicted distance matrix cannot produce 0 * (-inf) = NaN.
            log_dist = jnp.log(jnp.where(offdiag, dist, one))
            ce_full = jnp.sum(gd_off * log_dist, keepdims=True)            # (1,1)
            row_sum = jnp.sum(jnp.where(offdiag, dist, zero),
                              axis=1, keepdims=True)                       # (n,1)
            gd_row_sum = jnp.sum(gd_off, axis=1, keepdims=True)            # (n,1)
            ce_norm = jnp.sum(gd_row_sum * jnp.log(row_sum), keepdims=True)
            slice_dist = ce_full - ce_norm                                 # (1,1)

            # direct loss: (direct*adj)*(adj^T - adj) == -direct exactly where
            # D == 1 and D^T != 1 (adj, adj^T are {0,1}); 0 elsewhere.
            x = jnp.where((D == one) & (D_T != one), -direct, zero)
            lrelu = jnp.where(x >= zero, x, slope * x)
            slice_direct = jnp.sum(lrelu, keepdims=True)                   # (1,1)

            dist_acc_ref[...] += jnp.broadcast_to(slice_dist, dist_acc_ref.shape)
            direct_acc_ref[...] += jnp.broadcast_to(slice_direct,
                                                    direct_acc_ref.shape)

        if ragged:
            # ragged last block: slices past the true batch size hold undefined
            # VMEM contents -- never read them.
            pl.when(g * tb + i < b_total)(do_slice)
        else:
            do_slice()

    # fold beta and the per-matrix normalizations into two constants,
    # applied once per grid step.
    scale_dist = jnp.float32(-BETA / (n * (n - 1)))
    scale_dir = jnp.float32(1.0 / (n * n))
    # lane-dense (8, 128) partial tile; the wrapper reads [:, 0, 0]
    out_ref[0] = scale_dist * dist_acc_ref[...] + scale_dir * direct_acc_ref[...]


def graph_matrix_loss(ud_mats, d_mats, dist_mats, direct_mats, *, tb=None):
    """All inputs are (B, N, N). Returns a scalar float32 loss."""
    # ground_UD_matrix is never used by the forward pass: accept it for API
    # parity but do NOT hand it to pallas_call (no HBM->VMEM DMA generated).
    del ud_mats

    B, N, _ = d_mats.shape
    # Keep inputs in their native dtypes (bf16 / int stay narrow in HBM); the
    # kernel casts per-slice instead of writing f32 copies through HBM.
    bytes_per_slice = (d_mats.dtype.itemsize + dist_mats.dtype.itemsize
                       + direct_mats.dtype.itemsize) * N * N

    try:
        vmem_cap = int(pltpu.get_tpu_info().vmem_capacity_bytes)
    except Exception:
        vmem_cap = 0
    if vmem_cap <= 0:
        vmem_cap = 64 << 20   # conservative per-TC fallback (v7x)

    if tb is None:
        # double-buffered input budget: ~32 MiB on 128-MiB parts (v5e/v6e),
        # ~45% of VMEM on 64-MiB v7x, leaving room for per-slice temporaries.
        input_budget = min(32 << 20, int(0.45 * vmem_cap))
        tb = max(1, input_budget // (2 * bytes_per_slice))
        if B >= 2:
            tb = min(tb, pl.cdiv(B, 2))   # keep >= 2 grid steps for v7x's 2 TCs
        tb = int(max(1, min(tb, B, 128)))
    tb = int(max(1, min(tb, B)))

    G = pl.cdiv(B, tb)
    block_bytes = bytes_per_slice * tb
    # double-buffered input blocks + ~a dozen (N,N) f32 temporaries + headroom,
    # clamped to 75% of physical VMEM (=> <= 48 MiB on v7x, ~96 MiB elsewhere).
    vmem_limit = int(min(int(0.75 * vmem_cap),
                         max(32 << 20,
                             2 * block_bytes + 12 * N * N * 4 + (8 << 20))))

    kernel = functools.partial(_graph_loss_kernel, b_total=B)
    in_spec = pl.BlockSpec((tb, N, N), lambda gi: (gi, 0, 0))
    out_spec = pl.BlockSpec((1, 8, 128), lambda gi: (gi, 0, 0))

    partials = pl.pallas_call(
        kernel,
        out_shape=jax.ShapeDtypeStruct((G, 8, 128), jnp.float32),
        grid_spec=pltpu.PrefetchScalarGridSpec(
            num_scalar_prefetch=0,
            grid=(G,),
            in_specs=[in_spec, in_spec, in_spec],
            out_specs=out_spec,
            scratch_shapes=[pltpu.VMEM((8, 128), jnp.float32),
                            pltpu.VMEM((8, 128), jnp.float32)],
        ),
        compiler_params=pltpu.CompilerParams(
            dimension_semantics=("parallel",),
            vmem_limit_bytes=vmem_limit),
    )(d_mats, dist_mats, direct_mats)

    # independent per-grid-step partial sums -> final mean in the wrapper
    return jnp.sum(partials[:, 0, 0]) / jnp.float32(B)


def _reference_loss(ud_mats, d_mats, dist_mats, direct_mats):
    """Pure-JAX transcription of the PyTorch forward (per-batch loop)."""
    del ud_mats
    B, N, _ = d_mats.shape
    offdiag = ~jnp.eye(N, dtype=bool)
    total = jnp.float32(0.0)
    for b in range(B):
        D = d_mats[b]
        dist = dist_mats[b]
        direct = direct_mats[b]
        gpd = jnp.where((D > 0) & (D < 3), D, 0.0)
        ground_dist = gpd + gpd.T
        adj = jnp.where(D == 1, 1.0, 0.0)
        direct_m = direct * adj
        # remove_diagonal_flat(..., remove=True, keeprow=True, normrow=True)
        wd_dist = dist[offdiag].reshape(N, N - 1)
        wd_dist = wd_dist / jnp.sum(wd_dist, axis=1, keepdims=True)
        wd_gd = ground_dist[offdiag].reshape(N, N - 1)
        dist_loss = -jnp.mean(wd_gd * jnp.log(wd_dist))
        x = direct_m * (adj.T - adj)
        direct_loss = jnp.mean(jnp.where(x >= 0, x, NEG_SLOPE * x))
        total += BETA * dist_loss + direct_loss
    return total / B


if __name__ == "__main__":
    key = jax.random.PRNGKey(0)
    B, N = 2, 16
    k1, k2, k3, k4, k5, k6, k7, k8 = jax.random.split(key, 8)

    # ground path matrices: small non-negative integers (as float32)
    ud_mats = jax.random.randint(k1, (B, N, N), 0, 5).astype(jnp.float32)
    d_mats = jax.random.randint(k2, (B, N, N), 0, 5).astype(jnp.float32)
    # predicted distance matrix: strictly positive so log() is finite
    dist_mats = jax.random.uniform(k3, (B, N, N), jnp.float32, 0.1, 1.0)
    # predicted direction matrix
    direct_mats = jax.random.normal(k4, (B, N, N), jnp.float32)

    loss = graph_matrix_loss(ud_mats, d_mats, dist_mats, direct_mats)
    jax.block_until_ready(loss)
    ref = _reference_loss(ud_mats, d_mats, dist_mats, direct_mats)
    assert jnp.allclose(loss, ref, rtol=1e-5, atol=1e-5), (loss, ref)

    # also exercise the multi-step grid + ragged-last-block path (B=3, tb=2)
    B2 = 3
    ud2 = jax.random.randint(k5, (B2, N, N), 0, 5).astype(jnp.float32)
    d2 = jax.random.randint(k6, (B2, N, N), 0, 5).astype(jnp.float32)
    dist2 = jax.random.uniform(k7, (B2, N, N), jnp.float32, 0.1, 1.0)
    dir2 = jax.random.normal(k8, (B2, N, N), jnp.float32)
    loss2 = graph_matrix_loss(ud2, d2, dist2, dir2, tb=2)
    jax.block_until_ready(loss2)
    ref2 = _reference_loss(ud2, d2, dist2, dir2)
    assert jnp.allclose(loss2, ref2, rtol=1e-5, atol=1e-5), (loss2, ref2)

    print("KERNEL_OK")
</pallas_src>

<mosaic_0001>
module attributes {stable_mosaic.version = 11 : i64} {
  func.func @_graph_loss_kernel(%arg0: i32, %arg1: memref<1x16x16xf32, #tpu.memory_space<vmem>>, %arg2: memref<1x16x16xf32, #tpu.memory_space<vmem>>, %arg3: memref<1x16x16xf32, #tpu.memory_space<vmem>>, %arg4: memref<1x8x128xf32, #tpu.memory_space<vmem>>, %arg5: memref<8x128xf32, #tpu.memory_space<vmem>>, %arg6: memref<8x128xf32, #tpu.memory_space<vmem>>) attributes {dimension_semantics = [#tpu.dimension_semantics<parallel>], iteration_bounds = array<i64: 2>, scalar_prefetch = 0 : i64, scratch_operands = 2 : i64, tpu.core_type = #tpu.core_type<tc>, window_params = [{transform_indices = @transform_0, window_bounds = array<i64: 1, 16, 16>}, {transform_indices = @transform_1, window_bounds = array<i64: 1, 16, 16>}, {transform_indices = @transform_2, window_bounds = array<i64: 1, 16, 16>}, {transform_indices = @transform_3, window_bounds = array<i64: 1, 8, 128>}]} {
    %0 = tpu.iota {dimensions = array<i32: 0>} : vector<16x16xi32>
    %1 = tpu.iota {dimensions = array<i32: 1>} : vector<16x16xi32>
    %2 = arith.cmpi ne, %0, %1 : vector<16x16xi32>
    %cst = arith.constant 0.000000e+00 : f32
    %3 = vector.broadcast %cst : f32 to vector<8x128xf32>
    %c0 = arith.constant 0 : index
    %c0_0 = arith.constant 0 : index
    %4 = vector.load %arg5[%c0, %c0_0] : memref<8x128xf32, #tpu.memory_space<vmem>>, vector<8x128xf32>
    tpu.vector_store %arg5[%c0, %c0_0], %3 {strides = array<i32>} : memref<8x128xf32, #tpu.memory_space<vmem>>, vector<8x128xf32>,
    %cst_1 = arith.constant 0.000000e+00 : f32
    %5 = vector.broadcast %cst_1 : f32 to vector<8x128xf32>
    %c0_2 = arith.constant 0 : index
    %c0_3 = arith.constant 0 : index
    %6 = vector.load %arg6[%c0_2, %c0_3] : memref<8x128xf32, #tpu.memory_space<vmem>>, vector<8x128xf32>
    tpu.vector_store %arg6[%c0_2, %c0_3], %5 {strides = array<i32>} : memref<8x128xf32, #tpu.memory_space<vmem>>, vector<8x128xf32>,
    %cst_4 = arith.constant 0.000000e+00 : f32
    %cst_5 = arith.constant 3.000000e+00 : f32
    %cst_6 = arith.constant 1.000000e+00 : f32
    %cst_7 = arith.constant 0.00999999977 : f32
    %c0_i32 = arith.constant 0 : i32
    %c1_i32 = arith.constant 1 : i32
    %7 = arith.muli %c0_i32, %c1_i32 : i32
    %c0_i32_8 = arith.constant 0 : i32
    %8 = arith.addi %c0_i32_8, %7 : i32
    %9 = arith.index_cast %8 : i32 to index
    %c0_9 = arith.constant 0 : index
    %c0_10 = arith.constant 0 : index
    %10 = vector.load %arg1[%9, %c0_9, %c0_10] : memref<1x16x16xf32, #tpu.memory_space<vmem>>, vector<1x16x16xf32>
    %11 = vector.shape_cast %10 : vector<1x16x16xf32> to vector<16x16xf32>
    %12 = tpu.transpose %11, [1, 0] : vector<16x16xf32> -> vector<16x16xf32>
    %13 = arith.index_cast %8 : i32 to index
    %c0_11 = arith.constant 0 : index
    %c0_12 = arith.constant 0 : index
    %14 = vector.load %arg2[%13, %c0_11, %c0_12] : memref<1x16x16xf32, #tpu.memory_space<vmem>>, vector<1x16x16xf32>
    %15 = vector.shape_cast %14 : vector<1x16x16xf32> to vector<16x16xf32>
    %16 = arith.index_cast %8 : i32 to index
    %c0_13 = arith.constant 0 : index
    %c0_14 = arith.constant 0 : index
    %17 = vector.load %arg3[%16, %c0_13, %c0_14] : memref<1x16x16xf32, #tpu.memory_space<vmem>>, vector<1x16x16xf32>
    %18 = vector.shape_cast %17 : vector<1x16x16xf32> to vector<16x16xf32>
    %19 = vector.broadcast %cst_4 : f32 to vector<16x16xf32>
    %20 = arith.cmpf ogt, %11, %19 : vector<16x16xf32>
    %21 = vector.broadcast %cst_5 : f32 to vector<16x16xf32>
    %22 = arith.cmpf olt, %11, %21 : vector<16x16xf32>
    %23 = arith.andi %20, %22 : vector<16x16xi1>
    %24 = vector.broadcast %cst_4 : f32 to vector<16x16xf32>
    %25 = arith.select %23, %11, %24 : vector<16x16xi1>, vector<16x16xf32>
    %26 = vector.broadcast %cst_4 : f32 to vector<16x16xf32>
    %27 = arith.cmpf ogt, %12, %26 : vector<16x16xf32>
    %28 = vector.broadcast %cst_5 : f32 to vector<16x16xf32>
    %29 = arith.cmpf olt, %12, %28 : vector<16x16xf32>
    %30 = arith.andi %27, %29 : vector<16x16xi1>
    %31 = vector.broadcast %cst_4 : f32 to vector<16x16xf32>
    %32 = arith.select %30, %12, %31 : vector<16x16xi1>, vector<16x16xf32>
    %33 = arith.addf %25, %32 : vector<16x16xf32>
    %34 = vector.broadcast %cst_4 : f32 to vector<16x16xf32>
    %35 = arith.select %2, %33, %34 : vector<16x16xi1>, vector<16x16xf32>
    %36 = vector.broadcast %cst_6 : f32 to vector<16x16xf32>
    %37 = arith.select %2, %15, %36 : vector<16x16xi1>, vector<16x16xf32>
    %38 = math.log %37 : vector<16x16xf32>
    %39 = arith.mulf %35, %38 : vector<16x16xf32>
    %40 = vector.shape_cast %39 : vector<16x16xf32> to vector<1x16x16xf32>
    %cst_15 = arith.constant dense<0.000000e+00> : vector<1xf32>
    %41 = vector.multi_reduction <add>, %40, %cst_15 [1, 2] : vector<1x16x16xf32> to vector<1xf32>
    %42 = vector.shape_cast %41 : vector<1xf32> to vector<1x1x1xf32>
    %43 = vector.extract %42[0, 0, 0] : f32 from vector<1x1x1xf32>
    %44 = vector.broadcast %43 : f32 to vector<1x1xf32>
    %45 = vector.broadcast %cst_4 : f32 to vector<16x16xf32>
    %46 = arith.select %2, %15, %45 : vector<16x16xi1>, vector<16x16xf32>
    %cst_16 = arith.constant dense<0.000000e+00> : vector<16xf32>
    %47 = vector.multi_reduction <add>, %46, %cst_16 [1] : vector<16x16xf32> to vector<16xf32>
    %48 = vector.shape_cast %47 : vector<16xf32> to vector<16x1xf32>
    %cst_17 = arith.constant dense<0.000000e+00> : vector<16xf32>
    %49 = vector.multi_reduction <add>, %35, %cst_17 [1] : vector<16x16xf32> to vector<16xf32>
    %50 = vector.shape_cast %49 : vector<16xf32> to vector<16x1xf32>
    %51 = math.log %48 : vector<16x1xf32>
    %52 = arith.mulf %50, %51 : vector<16x1xf32>
    %53 = vector.shape_cast %52 : vector<16x1xf32> to vector<1x16x1xf32>
    %cst_18 = arith.constant dense<0.000000e+00> : vector<1xf32>
    %54 = vector.multi_reduction <add>, %53, %cst_18 [1, 2] : vector<1x16x1xf32> to vector<1xf32>
    %55 = vector.shape_cast %54 : vector<1xf32> to vector<1x1x1xf32>
    %56 = vector.extract %55[0, 0, 0] : f32 from vector<1x1x1xf32>
    %57 = vector.broadcast %56 : f32 to vector<1x1xf32>
    %58 = arith.subf %44, %57 : vector<1x1xf32>
    %59 = vector.broadcast %cst_6 : f32 to vector<16x16xf32>
    %60 = arith.cmpf oeq, %11, %59 : vector<16x16xf32>
    %61 = vector.broadcast %cst_6 : f32 to vector<16x16xf32>
    %62 = arith.cmpf one, %12, %61 : vector<16x16xf32>
    %63 = arith.andi %60, %62 : vector<16x16xi1>
    %cst_19 = arith.constant 0.000000e+00 : f32
    %64 = vector.broadcast %cst_19 : f32 to vector<16x16xf32>
    %65 = arith.subf %64, %18 : vector<16x16xf32>
    %66 = vector.broadcast %cst_4 : f32 to vector<16x16xf32>
    %67 = arith.select %63, %65, %66 : vector<16x16xi1>, vector<16x16xf32>
    %68 = vector.broadcast %cst_4 : f32 to vector<16x16xf32>
    %69 = arith.cmpf oge, %67, %68 : vector<16x16xf32>
    %70 = vector.broadcast %cst_7 : f32 to vector<16x16xf32>
    %71 = arith.mulf %70, %67 : vector<16x16xf32>
    %72 = arith.select %69, %67, %71 : vector<16x16xi1>, vector<16x16xf32>
    %73 = vector.shape_cast %72 : vector<16x16xf32> to vector<1x16x16xf32>
    %cst_20 = arith.constant dense<0.000000e+00> : vector<1xf32>
    %74 = vector.multi_reduction <add>, %73, %cst_20 [1, 2] : vector<1x16x16xf32> to vector<1xf32>
    %75 = vector.shape_cast %74 : vector<1xf32> to vector<1x1x1xf32>
    %76 = vector.extract %75[0, 0, 0] : f32 from vector<1x1x1xf32>
    %77 = vector.broadcast %76 : f32 to vector<1x1xf32>
    %c0_21 = arith.constant 0 : index
    %c0_22 = arith.constant 0 : index
    %78 = vector.load %arg5[%c0_21, %c0_22] : memref<8x128xf32, #tpu.memory_space<vmem>>, vector<8x128xf32>
    %79 = vector.shape_cast %58 : vector<1x1xf32> to vector<1x1xf32>
    %80 = vector.broadcast %79 : vector<1x1xf32> to vector<8x128xf32>
    %81 = arith.addf %78, %80 : vector<8x128xf32>
    %c0_23 = arith.constant 0 : index
    %c0_24 = arith.constant 0 : index
    %82 = vector.load %arg5[%c0_23, %c0_24] : memref<8x128xf32, #tpu.memory_space<vmem>>, vector<8x128xf32>
    tpu.vector_store %arg5[%c0_23, %c0_24], %81 {strides = array<i32>} : memref<8x128xf32, #tpu.memory_space<vmem>>, vector<8x128xf32>,
    %c0_25 = arith.constant 0 : index
    %c0_26 = arith.constant 0 : index
    %83 = vector.load %arg6[%c0_25, %c0_26] : memref<8x128xf32, #tpu.memory_space<vmem>>, vector<8x128xf32>
    %84 = vector.shape_cast %77 : vector<1x1xf32> to vector<1x1xf32>
    %85 = vector.broadcast %84 : vector<1x1xf32> to vector<8x128xf32>
    %86 = arith.addf %83, %85 : vector<8x128xf32>
    %c0_27 = arith.constant 0 : index
    %c0_28 = arith.constant 0 : index
    %87 = vector.load %arg6[%c0_27, %c0_28] : memref<8x128xf32, #tpu.memory_space<vmem>>, vector<8x128xf32>
    tpu.vector_store %arg6[%c0_27, %c0_28], %86 {strides = array<i32>} : memref<8x128xf32, #tpu.memory_space<vmem>>, vector<8x128xf32>,
    %c1_i32_29 = arith.constant 1 : i32
    %c0_30 = arith.constant 0 : index
    %c0_31 = arith.constant 0 : index
    %88 = vector.load %arg5[%c0_30, %c0_31] : memref<8x128xf32, #tpu.memory_space<vmem>>, vector<8x128xf32>
    %cst_32 = arith.constant -4.16666677E-4 : f32
    %89 = vector.broadcast %cst_32 : f32 to vector<8x128xf32>
    %90 = arith.mulf %89, %88 : vector<8x128xf32>
    %c0_33 = arith.constant 0 : index
    %c0_34 = arith.constant 0 : index
    %91 = vector.load %arg6[%c0_33, %c0_34] : memref<8x128xf32, #tpu.memory_space<vmem>>, vector<8x128xf32>
    %cst_35 = arith.constant 3.906250e-03 : f32
    %92 = vector.broadcast %cst_35 : f32 to vector<8x128xf32>
    %93 = arith.mulf %92, %91 : vector<8x128xf32>
    %94 = arith.addf %90, %93 : vector<8x128xf32>
    %c0_36 = arith.constant 0 : index
    %c0_37 = arith.constant 0 : index
    %c0_38 = arith.constant 0 : index
    %95 = vector.load %arg4[%c0_36, %c0_37, %c0_38] : memref<1x8x128xf32, #tpu.memory_space<vmem>>, vector<1x8x128xf32>
    %96 = vector.shape_cast %95 : vector<1x8x128xf32> to vector<8x128xf32>
    %97 = vector.shape_cast %94 : vector<8x128xf32> to vector<1x8x128xf32>
    tpu.vector_store %arg4[%c0_36, %c0_37, %c0_38], %97 {strides = array<i32>} : memref<1x8x128xf32, #tpu.memory_space<vmem>>, vector<1x8x128xf32>,
    return
  }
  func.func @transform_0(%arg0: i32) -> (i32, i32, i32) {
    %c0_i32 = arith.constant 0 : i32
    %c0_i32_0 = arith.constant 0 : i32
    %c0_i32_1 = arith.constant 0 : i32
    return %arg0, %c0_i32, %c0_i32_0 : i32, i32, i32
  }
  func.func @transform_1(%arg0: i32) -> (i32, i32, i32) {
    %c0_i32 = arith.constant 0 : i32
    %c0_i32_0 = arith.constant 0 : i32
    %c0_i32_1 = arith.constant 0 : i32
    return %arg0, %c0_i32, %c0_i32_0 : i32, i32, i32
  }
  func.func @transform_2(%arg0: i32) -> (i32, i32, i32) {
    %c0_i32 = arith.constant 0 : i32
    %c0_i32_0 = arith.constant 0 : i32
    %c0_i32_1 = arith.constant 0 : i32
    return %arg0, %c0_i32, %c0_i32_0 : i32, i32, i32
  }
  func.func @transform_3(%arg0: i32) -> (i32, i32, i32) {
    %c0_i32 = arith.constant 0 : i32
    %c0_i32_0 = arith.constant 0 : i32
    %c0_i32_1 = arith.constant 0 : i32
    return %arg0, %c0_i32, %c0_i32_0 : i32, i32, i32
  }
}

</mosaic_0001>

<llo_original>
// kernel: tpu_custom_call.1
$region0: #{tpu_custom_call.1}
  #allocation0 [shape = 'u32[]', space=smem, size = 0x4, offset = 0x4, fixed_abs, tag = 'smem constant byte address 0x4 - core index']
  #allocation1 [shape = 'u32[144,128]{1,0:T(1,128)}', space=vmem, size = 0x12000, scoped, tag = 'internal scratch']
  #allocation2 [shape = 'f32[8,128]{1,0:T(8,128)}', space=vmem, size = 0x1000, scoped, tag = 'scratch operand']
  #allocation3 [shape = 'f32[8,128]{1,0:T(8,128)}', space=vmem, size = 0x1000, scoped, tag = 'scratch operand']
  %s0 = inlined_call_operand.hbm [shape: f32[2,16,16], index: 0, kind: input, shape index: {}]
  %s1 = inlined_call_operand.hbm [shape: f32[2,16,16], index: 1, kind: input, shape index: {}]
  %s2 = inlined_call_operand.hbm [shape: f32[2,16,16], index: 2, kind: input, shape index: {}]
  %s3 = inlined_call_operand.hbm [shape: f32[2,8,128], index: 3, kind: output, shape index: {}]
  %s4 = sld [smem:[#allocation0]]
  $region57: #{tpu_custom_call.1} parent=0
    _
  %s6 = ssub.s32 1, %s4
  %s7 = scalar_select 0, %s6, %s4
  $region1: #{tpu_custom_call.1} parent=0
    #allocation4 [shape = 'u8[16384]{0}', space=vmem, size = 0x4000, scoped, tag = 'input window, operand 0']
    #allocation5 [shape = 's32[2]{0}', space=sflag, size = 0x8, scoped, tag = 'scoped memory for tpu_custom_call.1']
    #allocation6 [shape = 's32[2]{0}', space=sflag, size = 0x8, scoped, tag = 'scoped memory for tpu_custom_call.1']
    #allocation7 [shape = 'u8[16384]{0}', space=vmem, size = 0x4000, scoped, tag = 'input window, operand 1']
    #allocation8 [shape = 's32[2]{0}', space=sflag, size = 0x8, scoped, tag = 'scoped memory for tpu_custom_call.1']
    #allocation9 [shape = 'u8[16384]{0}', space=vmem, size = 0x4000, scoped, tag = 'input window, operand 2']
    #allocation10 [shape = 'u8[8192]{0}', space=vmem, size = 0x2000, scoped, tag = 'output window, operand 0']
    %8 = vsyncpa [#allocation5], 0
    %s9 = scalar_lea.sflag [#allocation5], 1
    %10 = vsyncpa %s9, 0
    %11 = vsyncpa [#allocation8], 0
    %s12 = scalar_lea.sflag [#allocation8], 1
    %13 = vsyncpa %s12, 0
    %14 = vsyncpa [#allocation6], 0
    %s15 = scalar_lea.sflag [#allocation6], 1
    %16 = vsyncpa %s15, 0
    loop: start=0, step=1, limit=4
    $region2: #{tpu_custom_call.1} parent=1 // loop_pre_header
      _
    $region3: #{tpu_custom_call.1} parent=1 // loop_header
      %s18 = sphi 0, %s22
      %p19 = scmp.ge.s32.totalorder %s18, 4
      %s28 = sphi 0, %s30
      %s31 = sphi 0, %s28
      %s32 = sphi 0, %s31
      %s48 = sphi 0, %s32
      %s54 = sphi 0, %s56
      %s57 = sphi 0, %s54
      %s58 = sphi 0, %s57
      %s74 = sphi 0, %s58
      %s80 = sphi 0, %s82
      %s83 = sphi 0, %s80
      %s84 = sphi 0, %s83
      %s100 = sphi 0, %s84
      %s106 = sphi 0, %s108
      %s109 = sphi 0, %s106
      %s110 = sphi 0, %s109
      %s126 = sphi 0, %s110
    $region4: #{tpu_custom_call.1} parent=1 // loop_header_branch
      %21 = sbr.rel (%p19) target = $region8
    $region5: #{tpu_custom_call.1} parent=1 // loop_body
      %s23 = ssub.s32 %s18, 1
      %s24 = ssub.s32 %s18, 2
      %s25 = sadd.s32 %s18, 1
      %s26 = ssub.s32 %s18, %s25
      %p27 = scmp.eq.s32.totalorder %s26, 0
      %s29 = sadd.s32 %s28, 1
      %s30 = scalar_select %p27, %s28, %s29
      %p33 = pneg %p27
      %p34 = scmp.eq.s32.totalorder %s18, 1
      %p35 = por %p33, %p34
      %p36 = scmp.ne.s32.totalorder %s28, %s31
      %p37 = scmp.eq.s32.totalorder %s18, 0
      %p38 = por %p36, %p37
      %p39 = scmp.ne.s32.totalorder %s28, %s31
      %p40 = scmp.eq.s32.totalorder %s23, 1
      %p41 = por %p39, %p40
      %p42 = scmp.ne.s32.totalorder %s31, %s32
      %p43 = scmp.eq.s32.totalorder %s23, 0
      %p44 = por %p42, %p43
      %p45 = scmp.ne.s32.totalorder %s31, %s32
      %p46 = scmp.eq.s32.totalorder %s24, 1
      %p47 = por %p45, %p46
      %p49 = scmp.ne.s32.totalorder %s32, %s48
      %p50 = scmp.eq.s32.totalorder %s24, 0
      %p51 = por %p49, %p50
      %s52 = ssub.s32 %s18, %s25
      %p53 = scmp.eq.s32.totalorder %s52, 0
      %s55 = sadd.s32 %s54, 1
      %s56 = scalar_select %p53, %s54, %s55
      %p59 = pneg %p53
      %p60 = scmp.eq.s32.totalorder %s18, 1
      %p61 = por %p59, %p60
      %p62 = scmp.ne.s32.totalorder %s54, %s57
      %p63 = scmp.eq.s32.totalorder %s18, 0
      %p64 = por %p62, %p63
      %p65 = scmp.ne.s32.totalorder %s54, %s57
      %p66 = scmp.eq.s32.totalorder %s23, 1
      %p67 = por %p65, %p66
      %p68 = scmp.ne.s32.totalorder %s57, %s58
      %p69 = scmp.eq.s32.totalorder %s23, 0
      %p70 = por %p68, %p69
      %p71 = scmp.ne.s32.totalorder %s57, %s58
      %p72 = scmp.eq.s32.totalorder %s24, 1
      %p73 = por %p71, %p72
      %p75 = scmp.ne.s32.totalorder %s58, %s74
      %p76 = scmp.eq.s32.totalorder %s24, 0
      %p77 = por %p75, %p76
      %s78 = ssub.s32 %s18, %s25
      %p79 = scmp.eq.s32.totalorder %s78, 0
      %s81 = sadd.s32 %s80, 1
      %s82 = scalar_select %p79, %s80, %s81
      %p85 = pneg %p79
      %p86 = scmp.eq.s32.totalorder %s18, 1
      %p87 = por %p85, %p86
      %p88 = scmp.ne.s32.totalorder %s80, %s83
      %p89 = scmp.eq.s32.totalorder %s18, 0
      %p90 = por %p88, %p89
      %p91 = scmp.ne.s32.totalorder %s80, %s83
      %p92 = scmp.eq.s32.totalorder %s23, 1
      %p93 = por %p91, %p92
      %p94 = scmp.ne.s32.totalorder %s83, %s84
      %p95 = scmp.eq.s32.totalorder %s23, 0
      %p96 = por %p94, %p95
      %p97 = scmp.ne.s32.totalorder %s83, %s84
      %p98 = scmp.eq.s32.totalorder %s24, 1
      %p99 = por %p97, %p98
      %p101 = scmp.ne.s32.totalorder %s84, %s100
      %p102 = scmp.eq.s32.totalorder %s24, 0
      %p103 = por %p101, %p102
      %s104 = ssub.s32 %s18, %s25
      %p105 = scmp.eq.s32.totalorder %s104, 0
      %s107 = sadd.s32 %s106, 1
      %s108 = scalar_select %p105, %s106, %s107
      %p111 = pneg %p105
      %p112 = scmp.eq.s32.totalorder %s18, 1
      %p113 = por %p111, %p112
      %p114 = scmp.ne.s32.totalorder %s106, %s109
      %p115 = scmp.eq.s32.totalorder %s18, 0
      %p116 = por %p114, %p115
      %p117 = scmp.ne.s32.totalorder %s106, %s109
      %p118 = scmp.eq.s32.totalorder %s23, 1
      %p119 = por %p117, %p118
      %p120 = scmp.ne.s32.totalorder %s109, %s110
      %p121 = scmp.eq.s32.totalorder %s23, 0
      %p122 = por %p120, %p121
      %p123 = scmp.ne.s32.totalorder %s109, %s110
      %p124 = scmp.eq.s32.totalorder %s24, 1
      %p125 = por %p123, %p124
      %p127 = scmp.ne.s32.totalorder %s110, %s126
      %p128 = scmp.eq.s32.totalorder %s24, 0
      %p129 = por %p127, %p128
      %p130 = scmp.le.s32.totalorder 1, %s18
      %p131 = scmp.lt.s32.totalorder %s18, 3
      %p132 = pnand %p130, %p131
      %p133 = pneg %p132
      // Predicated region
      $region9: #{tpu_custom_call.1} parent=5 // pred_check
        _
      $region10: #{tpu_custom_call.1} parent=5 // pred_check_branch
        %135 = sbr.rel (%p132) target = $region12
      $region11: #{tpu_custom_call.1} parent=5 // pred_region
        %s136 = ssub.s32 %s18, 1
      $region12: #{tpu_custom_call.1} parent=5 // pred_fallthru
        _
      %p137 = scmp.lt.s32.totalorder %s18, 2
      // Predicated region
      $region13: #{tpu_custom_call.1} parent=5 // pred_check
        %p138 = pneg %p137
      $region14: #{tpu_custom_call.1} parent=5 // pred_check_branch
        %140 = sbr.rel (%p138) target = $region16
      $region15: #{tpu_custom_call.1} parent=5 // pred_region
        // Predicated region
        $region17: #{tpu_custom_call.1} parent=15 // pred_check
          %p141 = pneg %p38
        $region18: #{tpu_custom_call.1} parent=15 // pred_check_branch
          %143 = sbr.rel (%p141) target = $region20
        $region19: #{tpu_custom_call.1} parent=15 // pred_region
          %s144 = sand.u32 %s28, 1
          %s145 = scalar_lea.sflag [#allocation5], %s144
          %s146 = sand.u32 %s28, 1
          %s147 = smul.addr %s146, 16
          %s148 = scalar_lea.vmem [#allocation4], %s147
          %s150 = ssub.s32 256, 256
          %151 = vsyncadd %s145, %s150
          %s152 = smul.addr %s18, 2
          %s153 = smul.addr %s152, 128
          %s154 = scalar_lea.hbm %s0, %s153
          %s155 = sshll.u32 %s148, 4
          %s156 = int_to_ptr.vmem [resolvable:$true] %s155
          %161 = dma.hbm_to_vmem [thread:$0]  %s154, 256, %s156, %s145, 128, 128, 8
        $region20: #{tpu_custom_call.1} parent=15 // pred_fallthru
          _
        // Predicated region
        $region21: #{tpu_custom_call.1} parent=15 // pred_check
          %p162 = pneg %p64
        $region22: #{tpu_custom_call.1} parent=15 // pred_check_branch
          %164 = sbr.rel (%p162) target = $region24
        $region23: #{tpu_custom_call.1} parent=15 // pred_region
          %s165 = sand.u32 %s18, 1
          %s166 = scalar_lea.sflag [#allocation8], %s165
          %s167 = sand.u32 %s54, 1
          %s168 = smul.addr %s167, 16
          %s169 = scalar_lea.vmem [#allocation7], %s168
          %s171 = ssub.s32 256, 256
          %172 = vsyncadd %s166, %s171
          %s173 = smul.addr %s18, 2
          %s174 = smul.addr %s173, 128
          %s175 = scalar_lea.hbm %s1, %s174
          %s176 = sshll.u32 %s169, 4
          %s177 = int_to_ptr.vmem [resolvable:$true] %s176
          %182 = dma.hbm_to_vmem [thread:$0]  %s175, 256, %s177, %s166, 128, 128, 8
        $region24: #{tpu_custom_call.1} parent=15 // pred_fallthru
          _
        // Predicated region
        $region25: #{tpu_custom_call.1} parent=15 // pred_check
          %p183 = pneg %p90
        $region26: #{tpu_custom_call.1} parent=15 // pred_check_branch
          %185 = sbr.rel (%p183) target = $region28
        $region27: #{tpu_custom_call.1} parent=15 // pred_region
          %s186 = sand.u32 %s18, 1
          %s187 = scalar_lea.sflag [#allocation8], %s186
          %s188 = sand.u32 %s80, 1
          %s189 = smul.addr %s188, 16
          %s190 = scalar_lea.vmem [#allocation9], %s189
          %s192 = ssub.s32 256, 256
          %193 = vsyncadd %s187, %s192
          %s194 = smul.addr %s18, 2
          %s195 = smul.addr %s194, 128
          %s196 = scalar_lea.hbm %s2, %s195
          %s197 = sshll.u32 %s190, 4
          %s198 = int_to_ptr.vmem [resolvable:$true] %s197
          %203 = dma.hbm_to_vmem [thread:$0]  %s196, 256, %s198, %s187, 128, 128, 8
        $region28: #{tpu_custom_call.1} parent=15 // pred_fallthru
          _
      $region16: #{tpu_custom_call.1} parent=5 // pred_fallthru
        _
      %p204 = scmp.le.s32.totalorder 1, %s18
      %p205 = scmp.lt.s32.totalorder %s18, 3
      %p206 = pnand %p204, %p205
      %p207 = pneg %p206
      // Predicated region
      $region29: #{tpu_custom_call.1} parent=5 // pred_check
        _
      $region30: #{tpu_custom_call.1} parent=5 // pred_check_branch
        %209 = sbr.rel (%p206) target = $region32
      $region31: #{tpu_custom_call.1} parent=5 // pred_region
        %s210 = ssub.s32 %s18, 1
        %s211 = sand.u32 %s31, 1
        %s212 = scalar_lea.sflag [#allocation5], %s211
        %s213 = sand.u32 %s31, 1
        %s214 = smul.addr %s213, 16
        %s215 = scalar_lea.vmem [#allocation4], %s214
        // Predicated region
        $region33: #{tpu_custom_call.1} parent=31 // pred_check
          %p216 = pneg %p44
        $region34: #{tpu_custom_call.1} parent=31 // pred_check_branch
          %218 = sbr.rel (%p216) target = $region36
        $region35: #{tpu_custom_call.1} parent=31 // pred_region
          %219 = dma.done %s212, 256
        $region36: #{tpu_custom_call.1} parent=31 // pred_fallthru
          _
        %s220 = sand.u32 %s23, 1
        %s221 = scalar_lea.sflag [#allocation8], %s220
        %s222 = sand.u32 %s57, 1
        %s223 = smul.addr %s222, 16
        %s224 = scalar_lea.vmem [#allocation7], %s223
        // Predicated region
        $region37: #{tpu_custom_call.1} parent=31 // pred_check
          %p225 = pneg %p70
        $region38: #{tpu_custom_call.1} parent=31 // pred_check_branch
          %227 = sbr.rel (%p225) target = $region40
        $region39: #{tpu_custom_call.1} parent=31 // pred_region
          %228 = dma.done %s221, 256
        $region40: #{tpu_custom_call.1} parent=31 // pred_fallthru
          _
        %s229 = sand.u32 %s23, 1
        %s230 = scalar_lea.sflag [#allocation8], %s229
        %s231 = sand.u32 %s83, 1
        %s232 = smul.addr %s231, 16
        %s233 = scalar_lea.vmem [#allocation9], %s232
        // Predicated region
        $region41: #{tpu_custom_call.1} parent=31 // pred_check
          %p234 = pneg %p96
        $region42: #{tpu_custom_call.1} parent=31 // pred_check_branch
          %236 = sbr.rel (%p234) target = $region44
        $region43: #{tpu_custom_call.1} parent=31 // pred_region
          %237 = dma.done %s230, 256
        $region44: #{tpu_custom_call.1} parent=31 // pred_fallthru
          _
        %s238 = sand.u32 %s31, 1
        %s239 = scalar_lea.sflag [#allocation5], %s238
        %s240 = sand.u32 %s31, 1
        %s241 = smul.addr %s240, 16
        %s242 = scalar_lea.vmem [#allocation4], %s241
        %p243 = pneg %p44
        %p244 = pneg %p41
        %s245 = sand.u32 %s23, 1
        %s246 = scalar_lea.sflag [#allocation8], %s245
        %s247 = sand.u32 %s57, 1
        %s248 = smul.addr %s247, 16
        %s249 = scalar_lea.vmem [#allocation7], %s248
        %p250 = pneg %p70
        %p251 = pneg %p67
        %s252 = sand.u32 %s23, 1
        %s253 = scalar_lea.sflag [#allocation8], %s252
        %s254 = sand.u32 %s83, 1
        %s255 = smul.addr %s254, 16
        %s256 = scalar_lea.vmem [#allocation9], %s255
        %p257 = pneg %p96
        %p258 = pneg %p93
        %p259 = pneg %p122
        %p260 = pneg %p119
        %s261 = sand.u32 %s109, 1
        %s262 = scalar_lea.sflag [#allocation6], %s261
        %s263 = sand.u32 %s109, 1
        %s264 = smul.addr %s263, 8
        %s265 = scalar_lea.vmem [#allocation10], %s264
        %v266 = vlaneseq
        %v267 = vshrl.u32 %v266, 7
        %v268 = vadd.s32 %v267, 8
        %v269 = vlaneseq
        %v270 = vand.u32 %v269, 127
        %vm271 = vcmp.ne.s32.totalorder %v267, %v270
        %vm272 = vcmp.ne.s32.totalorder %v268, %v270
        %273 = vst [vmem:[#allocation2] sm:$0xff] 0.0
        %274 = vst [vmem:[#allocation3] sm:$0xff] 0.0
        %v275 = vld [vmem:[%s215] sm:$0xff]
        %v276 = vld [vmem:[%s215 + $0x8] sm:$0xff]
        %277 = vxpose.xlu0.b32.start [1/16] %v275, 128
        %278 = vxpose.xlu0.b32.cont [2/16] %v276, 128
        %279 = vxpose.xlu0.b32.cont [3/16] 0.0, 128
        %280 = vxpose.xlu0.b32.cont [4/16] 0.0, 128
        %281 = vxpose.xlu0.b32.cont [5/16] 0.0, 128
        %282 = vxpose.xlu0.b32.cont [6/16] 0.0, 128
        %283 = vxpose.xlu0.b32.cont [7/16] 0.0, 128
        %284 = vxpose.xlu0.b32.cont [8/16] 0.0, 128
        %285 = vxpose.xlu0.b32.cont [9/16] 0.0, 128
        %286 = vxpose.xlu0.b32.cont [10/16] 0.0, 128
        %287 = vxpose.xlu0.b32.cont [11/16] 0.0, 128
        %288 = vxpose.xlu0.b32.cont [12/16] 0.0, 128
        %289 = vxpose.xlu0.b32.cont [13/16] 0.0, 128
        %290 = vxpose.xlu0.b32.cont [14/16] 0.0, 128
        %291 = vxpose.xlu0.b32.cont [15/16] 0.0, 128
        %292 = vxpose.xlu0.b32.end [16/16] 0.0, 128
        %v293 = vpop.trf.xlu0
        %v294 = vpop.trf.xlu0
        %v295 = vpop.trf.xlu0
        %v296 = vpop.trf.xlu0
        %v297 = vpop.trf.xlu0
        %v298 = vpop.trf.xlu0
        %v299 = vpop.trf.xlu0
        %v300 = vpop.trf.xlu0
        %v301 = vpop.trf.xlu0
        %v302 = vpop.trf.xlu0
        %v303 = vpop.trf.xlu0
        %v304 = vpop.trf.xlu0
        %v305 = vpop.trf.xlu0
        %v306 = vpop.trf.xlu0
        %v307 = vpop.trf.xlu0
        %v308 = vpop.trf.xlu0
        %v309 = vld [vmem:[%s224] sm:$0xff]
        %v310 = vld [vmem:[%s224 + $0x8] sm:$0xff]
        %v311 = vld [vmem:[%s233] sm:$0xff]
        %v312 = vld [vmem:[%s233 + $0x8] sm:$0xff]
        %vm313 = vcmp.gt.f32.partialorder %v275, 0.0
        %vm314 = vcmp.gt.f32.partialorder %v276, 0.0
        %vm315 = vcmp.lt.f32.partialorder %v275, 3.0
        %vm316 = vcmp.lt.f32.partialorder %v276, 3.0
        %vm317 = vmand %vm313, %vm315
        %vm318 = vmand %vm314, %vm316
        %v319 = vsel %vm317, %v275, 0.0
        %v320 = vsel %vm318, %v276, 0.0
        %vm321 = vcmp.gt.f32.partialorder %v293, 0.0
        %vm322 = vcmp.gt.f32.partialorder %v294, 0.0
        %vm323 = vcmp.lt.f32.partialorder %v293, 3.0
        %vm324 = vcmp.lt.f32.partialorder %v294, 3.0
        %vm325 = vmand %vm321, %vm323
        %vm326 = vmand %vm322, %vm324
        %v327 = vsel %vm325, %v293, 0.0
        %v328 = vsel %vm326, %v294, 0.0
        %v329 = vadd.f32 %v319, %v327
        %v330 = vadd.f32 %v320, %v328
        %v331 = vsel %vm271, %v329, 0.0
        %v332 = vsel %vm272, %v330, 0.0
        %v333 = vsel %vm271, %v309, 1.0
        %v334 = vsel %vm272, %v310, 1.0
        %v335 = vlog2.pop %v333
        %v336 = vmul.f32 %v335, 0.6931472
        %v337 = vlog2.pop %v334
        %v338 = vmul.f32 %v337, 0.6931472
        %v339 = vmul.f32 %v331, %v336
        %v340 = vmul.f32 %v332, %v338
        %vm341 = vcmask 130048
        %v342 = vsel %vm341, %v339, 0.0
        %v343 = vsel %vm341, %v340, 0.0
        %v344 = vadd.f32 %v342, %v343
        %345 = vadd.xlane.f32.xlu0 %v344
        %v346 = vpop.xlane.xlu0 %345
        %v347 = vrot.slane %v346, 4
        %v348 = vadd.f32 %v346, %v347
        %v349 = vrot.slane %v348, 2
        %v350 = vadd.f32 %v348, %v349
        %v351 = vrot.slane %v350, 1
        %v352 = vadd.f32 %v350, %v351
        %s353 = vtos %v352
        %v354 = vstv %s353
        %v355 = vsel %vm271, %v309, 0.0
        %v356 = vsel %vm272, %v310, 0.0
        %v357 = vsel %vm341, %v355, 0.0
        %358 = vadd.xlane.f32.xlu0 %v357
        %v359 = vpop.xlane.xlu0 %358
        %v360 = vsel %vm341, %v356, 0.0
        %361 = vadd.xlane.f32.xlu0 %v360
        %v362 = vpop.xlane.xlu0 %361
        %v363 = vsel %vm341, %v331, 0.0
        %364 = vadd.xlane.f32.xlu0 %v363
        %v365 = vpop.xlane.xlu0 %364
        %v366 = vsel %vm341, %v332, 0.0
        %367 = vadd.xlane.f32.xlu0 %v366
        %v368 = vpop.xlane.xlu0 %367
        %v369 = vlog2.pop %v359
        %v370 = vmul.f32 %v369, 0.6931472
        %v371 = vlog2.pop %v362
        %v372 = vmul.f32 %v371, 0.6931472
        %v373 = vmul.f32 %v365, %v370
        %v374 = vmul.f32 %v368, %v372
        %vm375 = vcmask 7168
        %v376 = vsel %vm375, %v373, 0.0
        %v377 = vsel %vm375, %v374, 0.0
        %v378 = vadd.f32 %v376, %v377
        %379 = vadd.xlane.f32.xlu0 %v378
        %v380 = vpop.xlane.xlu0 %379
        %v381 = vrot.slane %v380, 4
        %v382 = vadd.f32 %v380, %v381
        %v383 = vrot.slane %v382, 2
        %v384 = vadd.f32 %v382, %v383
        %v385 = vrot.slane %v384, 1
        %v386 = vadd.f32 %v384, %v385
        %s387 = vtos %v386
        %v388 = vstv %s387
        %v389 = vsub.f32 %v354, %v388
        %vm390 = vcmp.eq.f32.partialorder %v275, 1.0
        %vm391 = vcmp.eq.f32.partialorder %v276, 1.0
        %vm392 = vcmp.ne.f32.partialorder %v293, 1.0
        %vm393 = vcmp.ne.f32.partialorder %v294, 1.0
        %vm394 = vmand %vm390, %vm392
        %vm395 = vmand %vm391, %vm393
        %v396 = vsub.f32 0.0, %v311
        %v397 = vsub.f32 0.0, %v312
        %v398 = vsel %vm394, %v396, 0.0
        %v399 = vsel %vm395, %v397, 0.0
        %vm400 = vcmp.ge.f32.partialorder %v398, 0.0
        %vm401 = vcmp.ge.f32.partialorder %v399, 0.0
        %v402 = vmul.f32 %v398, 0.01
        %v403 = vmul.f32 %v399, 0.01
        %v404 = vsel %vm400, %v398, %v402
        %v405 = vsel %vm401, %v399, %v403
        %v406 = vsel %vm341, %v404, 0.0
        %v407 = vsel %vm341, %v405, 0.0
        %v408 = vadd.f32 %v406, %v407
        %409 = vadd.xlane.f32.xlu0 %v408
        %v410 = vpop.xlane.xlu0 %409
        %v411 = vrot.slane %v410, 4
        %v412 = vadd.f32 %v410, %v411
        %v413 = vrot.slane %v412, 2
        %v414 = vadd.f32 %v412, %v413
        %v415 = vrot.slane %v414, 1
        %v416 = vadd.f32 %v414, %v415
        %s417 = vtos %v416
        %v418 = vld [vmem:[#allocation2] sm:$0xff]
        %v419 = vadd.f32 %v418, %v389
        %420 = vst [vmem:[#allocation2] sm:$0xff] %v419
        %v421 = vld [vmem:[#allocation3] sm:$0xff]
        %v422 = vstv %s417
        %v423 = vadd.f32 %v421, %v422
        %424 = vst [vmem:[#allocation3] sm:$0xff] %v423
        %v425 = vld [vmem:[#allocation2] sm:$0xff]
        %v426 = vmul.f32 %v425, -0.00041666668
        %v427 = vld [vmem:[#allocation3] sm:$0xff]
        %v428 = vmul.f32 %v427, 0.00390625
        %v429 = vadd.f32 %v426, %v428
        %430 = vst [vmem:[%s265] sm:$0xff] %v429
        %s431 = sand.u32 %s109, 1
        %s432 = scalar_lea.sflag [#allocation6], %s431
        %s433 = sand.u32 %s109, 1
        %s434 = smul.addr %s433, 8
        %s435 = scalar_lea.vmem [#allocation10], %s434
        // Predicated region
        $region45: #{tpu_custom_call.1} parent=31 // pred_check
          %p436 = pneg %p119
        $region46: #{tpu_custom_call.1} parent=31 // pred_check_branch
          %438 = sbr.rel (%p436) target = $region48
        $region47: #{tpu_custom_call.1} parent=31 // pred_region
          %s440 = ssub.s32 128, 128
          %441 = vsyncadd %s432, %s440
          %s442 = smul.addr %s23, 128
          %s443 = scalar_lea.hbm %s3, %s442
          %s445 = sshll.u32 %s435, 4
          %s446 = int_to_ptr.vmem [resolvable:$true] %s445
          %448 = dma.vmem_to_hbm [thread:$0]  %s446, 128, %s443, %s432
        $region48: #{tpu_custom_call.1} parent=31 // pred_fallthru
          _
      $region32: #{tpu_custom_call.1} parent=5 // pred_fallthru
        _
      %p449 = scmp.le.s32.totalorder 2, %s18
      // Predicated region
      $region49: #{tpu_custom_call.1} parent=5 // pred_check
        %p450 = pneg %p449
      $region50: #{tpu_custom_call.1} parent=5 // pred_check_branch
        %452 = sbr.rel (%p450) target = $region52
      $region51: #{tpu_custom_call.1} parent=5 // pred_region
        %s453 = ssub.s32 %s18, 2
        // Predicated region
        $region53: #{tpu_custom_call.1} parent=51 // pred_check
          %p454 = pneg %p125
        $region54: #{tpu_custom_call.1} parent=51 // pred_check_branch
          %456 = sbr.rel (%p454) target = $region56
        $region55: #{tpu_custom_call.1} parent=51 // pred_region
          %s457 = sand.u32 %s110, 1
          %s458 = scalar_lea.sflag [#allocation6], %s457
          %s459 = sand.u32 %s110, 1
          %s460 = smul.addr %s459, 8
          %s461 = scalar_lea.vmem [#allocation10], %s460
          %462 = dma.done %s458, 128
        $region56: #{tpu_custom_call.1} parent=51 // pred_fallthru
          _
      $region52: #{tpu_custom_call.1} parent=5 // pred_fallthru
        _
    $region6: #{tpu_custom_call.1} parent=1 // loop_footer
      %s22 = sadd.s32 1, %s18
    $region7: #{tpu_custom_call.1} parent=1 // loop_footer_branch
      %17 = sbr.rel target = $region3
    $region8: #{tpu_custom_call.1} parent=1 // loop_exit
      _
    %463 = vsyncpa [#allocation5], 1
    %s464 = scalar_lea.sflag [#allocation5], 1
    %465 = vsyncpa %s464, 1
    %466 = vsyncpa [#allocation8], 1
    %s467 = scalar_lea.sflag [#allocation8], 1
    %468 = vsyncpa %s467, 1
    %469 = vsyncpa [#allocation6], 1
    %s470 = scalar_lea.sflag [#allocation6], 1
    %471 = vsyncpa %s470, 1

</llo_original>
